<compile_context>
chip_gen: v6e
topology: v6e:2x2x1
jax: 0.10.0
libtpu: 0.0.40
codegen_flags: <defaults>
</compile_context>

<pallas_src>
import numpy as np
import jax
import jax.numpy as jnp
from jax.experimental import pallas as pl
from jax.experimental.pallas import tpu as pltpu

LANE = 128      # vreg lane width
SUBLANE = 8     # f32 sublane count
MAX_TB = 256    # max batch tile (fills MXU M dim on v6e/v7x; v5e may prefer 128)


def _round_up(x, m):
    return (x + m - 1) // m * m


def _cdiv(a, b):
    return -(-a // b)


def _sigmoid_1eup(z):
    # sigmoid(z) == 0.5 * tanh(z/2) + 0.5 : exactly one EUP op + cheap VPU ops.
    return 0.5 * jnp.tanh(0.5 * z) + 0.5


def _choose_hidden_tile(Kp, Hp, weight_itemsize, budget_bytes=28 << 20):
    """Largest lane-multiple hidden tile hn dividing Hp whose resident weight
    slab (Kp+Hp, 4*hn) — double-buffered when tiled — fits the VMEM budget."""
    n_blocks = Hp // LANE

    def slab_bytes(n_col):
        hn = Hp // n_col
        bufs = 1 if n_col == 1 else 2
        return (Kp + Hp) * 4 * hn * weight_itemsize * bufs

    n_col = 1
    while n_col < n_blocks and slab_bytes(n_col) > budget_bytes:
        n_col += 1
        while n_blocks % n_col:          # hn must divide Hp
            n_col += 1
    return Hp // n_col


# ----------------------------------------------------------------------------
# Kernel
# ----------------------------------------------------------------------------
def lstm_cell_kernel(xh_ref, c_ref, w_ref, b_ref, h_out_ref, c_out_ref):
    hn = c_ref.shape[1]                  # per-tile hidden width (multiple of 128)

    # Single fused contraction on the MXU: bf16 x bf16 -> f32 accumulation.
    gates = (jnp.dot(xh_ref[...], w_ref[...],
                     preferred_element_type=jnp.float32)
             + b_ref[...])               # (tb, 4*hn), f32

    # Lane-aligned static gate slices (gate order per slab: i, f, o, g).
    i = _sigmoid_1eup(gates[:, 0 * hn:1 * hn])
    f = _sigmoid_1eup(gates[:, 1 * hn:2 * hn])
    o = _sigmoid_1eup(gates[:, 2 * hn:3 * hn])
    g = _sigmoid_1eup(gates[:, 3 * hn:4 * hn])   # sigmoid: reference quirk, kept

    c_new = f * c_ref[...] + i * g
    h_out_ref[...] = (o * jnp.tanh(c_new)).astype(h_out_ref.dtype)
    c_out_ref[...] = c_new.astype(c_out_ref.dtype)


# ----------------------------------------------------------------------------
# Wrapper
# ----------------------------------------------------------------------------
def lstm_cell_pallas(x, ht, ct, w_fused, b_fused, hidden_dim, hn):
    """One LSTM_cell.forward step.

    w_fused : (Kp+Hp, 4*Hp) bf16, gates interleaved per hn-wide hidden slab.
    b_fused : (1, 4*Hp) f32, same column layout.
    """
    B, K = x.shape
    H = hidden_dim
    KHp, fourHp = w_fused.shape
    Hp = fourHp // 4
    Kp = KHp - Hp
    n_col = Hp // hn

    # Adaptive batch tiling: minimal sublane-aligned padding.
    n_b = _cdiv(B, MAX_TB)
    tb = _round_up(_cdiv(B, n_b), SUBLANE)
    Bp = n_b * tb

    compute_dtype = jnp.bfloat16

    # Build the fused [x | h] activation block (pad only if needed).
    xp = x.astype(compute_dtype)
    hp = ht.astype(compute_dtype)
    if (Bp, Kp) != (B, K):
        xp = jnp.pad(xp, ((0, Bp - B), (0, Kp - K)))
    if (Bp, Hp) != (B, H):
        hp = jnp.pad(hp, ((0, Bp - B), (0, Hp - H)))
    xh = jnp.concatenate([xp, hp], axis=1)          # (Bp, Kp+Hp) bf16

    cp = ct.astype(jnp.float32)
    if (Bp, Hp) != (B, H):
        cp = jnp.pad(cp, ((0, Bp - B), (0, Hp - H)))

    act_map = lambda i, j: (i, 0)                   # xh: full width, per batch tile
    col_map = lambda i, j: (i, j)                   # c / outputs: batch x hidden slab
    w_map = lambda i, j: (0, j)                     # weights: per hidden slab

    single_buf = (n_col == 1)                       # constant index_map -> 1 buffer

    # VMEM budget (bytes) -> explicit scoped-VMEM limit with headroom.
    w_bytes = KHp * 4 * hn * w_fused.dtype.itemsize * (1 if single_buf else 2)
    b_bytes = 4 * hn * b_fused.dtype.itemsize * (1 if single_buf else 2)
    act_bytes = 2 * tb * KHp * 2                    # xh, double-buffered, bf16
    io_bytes = 2 * 3 * tb * hn * 4                  # c in + h/c out, double-buffered
    tmp_bytes = 2 * tb * 4 * hn * 4                 # gates temp + slack
    vmem_needed = w_bytes + b_bytes + act_bytes + io_bytes + tmp_bytes
    vmem_limit = int(min(max(vmem_needed * 3 // 2 + (1 << 20), 16 << 20), 64 << 20))

    weight_stream = KHp * fourHp * w_fused.dtype.itemsize + fourHp * 4
    cost = pl.CostEstimate(
        flops=2 * Bp * KHp * fourHp,
        transcendentals=5 * Bp * Hp,                # 4 sigmoids + tanh per element
        bytes_accessed=int(Bp * KHp * 2             # xh in (bf16)
                           + Bp * Hp * 4            # c in
                           + weight_stream * (1 if single_buf else n_b)
                           + 2 * Bp * Hp * 4),      # h, c out
    )

    def _build(use_single_buffer_weights):
        def wspec(shape):
            if use_single_buffer_weights:
                return pl.BlockSpec(shape, w_map, pipeline_mode=pl.Buffered(1))
            return pl.BlockSpec(shape, w_map)

        return pl.pallas_call(
            lstm_cell_kernel,
            grid=(n_b, n_col),
            in_specs=[
                pl.BlockSpec((tb, KHp), act_map),   # [x | h], bf16
                pl.BlockSpec((tb, hn), col_map),    # c_t, f32
                wspec((KHp, 4 * hn)),               # fused weights (VMEM-resident)
                wspec((1, 4 * hn)),                 # fused bias
            ],
            out_specs=(pl.BlockSpec((tb, hn), col_map),
                       pl.BlockSpec((tb, hn), col_map)),
            out_shape=(jax.ShapeDtypeStruct((Bp, Hp), jnp.float32),
                       jax.ShapeDtypeStruct((Bp, Hp), jnp.float32)),
            compiler_params=pltpu.CompilerParams(
                dimension_semantics=("parallel", "arbitrary"),
                vmem_limit_bytes=vmem_limit),
            cost_estimate=cost,
        )

    try:
        h_pad, c_pad = _build(single_buf)(xh, cp, w_fused, b_fused)
    except Exception:
        # Fallback: some jax versions may reject Buffered(1); default
        # double-buffering is still correct, just uses 2x weight VMEM.
        h_pad, c_pad = _build(False)(xh, cp, w_fused, b_fused)

    if (Bp, Hp) != (B, H):
        return h_pad[:B, :H], c_pad[:B, :H]
    return h_pad, c_pad


# ----------------------------------------------------------------------------
# Parameter construction (mirrors the PyTorch module's 8 nn.Linear layers).
# ----------------------------------------------------------------------------
def init_linear(key, in_dim, out_dim):
    """PyTorch nn.Linear default init: U(-1/sqrt(in_dim), 1/sqrt(in_dim))."""
    k = 1.0 / jnp.sqrt(jnp.float32(in_dim))
    kw, kb = jax.random.split(key)
    w = jax.random.uniform(kw, (out_dim, in_dim), jnp.float32, -k, k)
    b = jax.random.uniform(kb, (out_dim,), jnp.float32, -k, k)
    return w, b


def make_params(key, input_dim, hidden_dim):
    """Per-gate (w, b) in nn.Linear layout, keys: xi,hi,xf,hf,xo,ho,xg,hg."""
    keys = jax.random.split(key, 8)
    params = {}
    for n, g in enumerate("ifog"):
        params["x" + g] = init_linear(keys[2 * n], input_dim, hidden_dim)
        params["h" + g] = init_linear(keys[2 * n + 1], hidden_dim, hidden_dim)
    return params


def fuse_and_pad_params(params, input_dim, hidden_dim, hn=None,
                        weight_dtype=jnp.bfloat16):
    """Fuse the 8 nn.Linear layers into one lane-padded weight slab.

    Returns:
      W  : (Kp+Hp, 4*Hp) weight_dtype — rows [x-dims | h-dims]; columns laid
           out as, for each hn-wide hidden slab j, the four gates [i|f|o|g]
           restricted to that slab (so a (Kp+Hp, 4*hn) column block is one
           self-contained grid step).
      b  : (1, 4*Hp) f32, same column layout (xb + hb summed per gate).
      hn : chosen hidden tile width (multiple of 128, divides Hp).
    """
    Kp = _round_up(input_dim, LANE)
    Hp = _round_up(hidden_dim, LANE)
    if hn is None:
        hn = _choose_hidden_tile(Kp, Hp, np.dtype(weight_dtype).itemsize)
    assert Hp % hn == 0 and hn % LANE == 0

    def gate_w(g):
        wx = params["x" + g][0]          # (H, K) nn.Linear layout
        wh = params["h" + g][0]          # (H, H)
        return jnp.concatenate([
            jnp.pad(wx.T, ((0, Kp - input_dim), (0, Hp - hidden_dim))),
            jnp.pad(wh.T, ((0, Hp - hidden_dim), (0, Hp - hidden_dim))),
        ], axis=0)                        # (Kp+Hp, Hp), padding is zero

    def gate_b(g):
        return jnp.pad(params["x" + g][1] + params["h" + g][1],
                       (0, Hp - hidden_dim))

    gw = {g: gate_w(g) for g in "ifog"}
    gb = {g: gate_b(g) for g in "ifog"}

    w_blocks, b_blocks = [], []
    for j in range(Hp // hn):
        sl = slice(j * hn, (j + 1) * hn)
        for g in "ifog":
            w_blocks.append(gw[g][:, sl])
            b_blocks.append(gb[g][sl])

    W = jnp.concatenate(w_blocks, axis=1).astype(weight_dtype)   # (Kp+Hp, 4*Hp)
    b = jnp.concatenate(b_blocks)[None, :].astype(jnp.float32)   # (1, 4*Hp)
    return W, b, hn


# ----------------------------------------------------------------------------
# Pure-JAX reference: mirrors the PyTorch forward gate-by-gate (unfused, f32).
# ----------------------------------------------------------------------------
def lstm_cell_ref(x, ht, ct, params):
    def lin(wb, v):
        w, b = wb
        return v @ w.T + b

    i = jax.nn.sigmoid(lin(params["xi"], x) + lin(params["hi"], ht))
    f = jax.nn.sigmoid(lin(params["xf"], x) + lin(params["hf"], ht))
    o = jax.nn.sigmoid(lin(params["xo"], x) + lin(params["ho"], ht))
    g = jax.nn.sigmoid(lin(params["xg"], x) + lin(params["hg"], ht))  # quirk
    c = f * ct + i * g
    h = o * jnp.tanh(c)
    return h, c


if __name__ == "__main__":
    B, input_dim, hidden_dim = 8, 16, 32

    key = jax.random.PRNGKey(0)
    k_x, k_p = jax.random.split(key)
    x = jax.random.normal(k_x, (B, input_dim), jnp.float32)

    # Defaults from the PyTorch forward: ht = zeros, ct = zeros + 1
    ht = jnp.zeros((B, hidden_dim), jnp.float32)
    ct = jnp.ones((B, hidden_dim), jnp.float32)

    params = make_params(k_p, input_dim, hidden_dim)
    w_fused, b_fused, hn = fuse_and_pad_params(params, input_dim, hidden_dim)

    h_out, c_out = lstm_cell_pallas(x, ht, ct, w_fused, b_fused, hidden_dim, hn)
    jax.block_until_ready((h_out, c_out))

    h_ref, c_ref = lstm_cell_ref(x, ht, ct, params)

    # bf16 matmul inputs (f32 accumulation) vs f32 reference -> loose tolerance.
    assert jnp.allclose(h_out, h_ref, atol=2e-2, rtol=2e-2), "h mismatch"
    assert jnp.allclose(c_out, c_ref, atol=2e-2, rtol=2e-2), "c mismatch"

    print("KERNEL_OK")
</pallas_src>

<mosaic_0001>
module attributes {stable_mosaic.version = 11 : i64} {
  func.func @lstm_cell_kernel(%arg0: i32, %arg1: i32, %arg2: memref<8x256xbf16, #tpu.memory_space<vmem>>, %arg3: memref<8x128xf32, #tpu.memory_space<vmem>>, %arg4: memref<256x512xbf16, #tpu.memory_space<vmem>>, %arg5: memref<1x512xf32, #tpu.memory_space<vmem>>, %arg6: memref<8x128xf32, #tpu.memory_space<vmem>>, %arg7: memref<8x128xf32, #tpu.memory_space<vmem>>) attributes {dimension_semantics = [#tpu.dimension_semantics<parallel>, #tpu.dimension_semantics<arbitrary>], iteration_bounds = array<i64: 1, 1>, scalar_prefetch = 0 : i64, scratch_operands = 0 : i64, tpu.core_type = #tpu.core_type<tc>, window_params = [{transform_indices = @transform_0, window_bounds = array<i64: 8, 256>}, {transform_indices = @transform_1, window_bounds = array<i64: 8, 128>}, {pipeline_mode = #tpu.pipeline_mode<synchronous>, transform_indices = @transform_2, window_bounds = array<i64: 256, 512>}, {pipeline_mode = #tpu.pipeline_mode<synchronous>, transform_indices = @transform_3, window_bounds = array<i64: 1, 512>}, {transform_indices = @transform_4, window_bounds = array<i64: 8, 128>}, {transform_indices = @transform_5, window_bounds = array<i64: 8, 128>}]} {
    %c0 = arith.constant 0 : index
    %c0_0 = arith.constant 0 : index
    %0 = vector.load %arg2[%c0, %c0_0] : memref<8x256xbf16, #tpu.memory_space<vmem>>, vector<8x256xbf16>
    %c0_1 = arith.constant 0 : index
    %c0_2 = arith.constant 0 : index
    %1 = vector.load %arg4[%c0_1, %c0_2] : memref<256x512xbf16, #tpu.memory_space<vmem>>, vector<256x512xbf16>
    %cst = arith.constant dense<0.000000e+00> : vector<8x512xf32>
    %2 = tpu.matmul %0, %1, %cst {dimension_numbers = #tpu.dot_dimension_numbers<[1], [0], [0], [1], [0, 0, 1, 1], [], []>} : vector<8x256xbf16>, vector<256x512xbf16>, vector<8x512xf32> -> vector<8x512xf32>
    %c0_3 = arith.constant 0 : index
    %c0_4 = arith.constant 0 : index
    %3 = vector.load %arg5[%c0_3, %c0_4] : memref<1x512xf32, #tpu.memory_space<vmem>>, vector<1x512xf32>
    %4 = vector.broadcast %3 : vector<1x512xf32> to vector<8x512xf32>
    %5 = arith.addf %2, %4 : vector<8x512xf32>
    %6 = vector.extract_strided_slice %5 {offsets = [0, 0], sizes = [8, 128], strides = [1, 1]} : vector<8x512xf32> to vector<8x128xf32>
    %cst_5 = arith.constant 5.000000e-01 : f32
    %7 = vector.broadcast %cst_5 : f32 to vector<8x128xf32>
    %8 = arith.mulf %7, %6 : vector<8x128xf32>
    %9 = math.tanh %8 : vector<8x128xf32>
    %cst_6 = arith.constant 5.000000e-01 : f32
    %10 = vector.broadcast %cst_6 : f32 to vector<8x128xf32>
    %11 = arith.mulf %10, %9 : vector<8x128xf32>
    %cst_7 = arith.constant 5.000000e-01 : f32
    %12 = vector.broadcast %cst_7 : f32 to vector<8x128xf32>
    %13 = arith.addf %11, %12 : vector<8x128xf32>
    %14 = vector.extract_strided_slice %5 {offsets = [0, 128], sizes = [8, 128], strides = [1, 1]} : vector<8x512xf32> to vector<8x128xf32>
    %cst_8 = arith.constant 5.000000e-01 : f32
    %15 = vector.broadcast %cst_8 : f32 to vector<8x128xf32>
    %16 = arith.mulf %15, %14 : vector<8x128xf32>
    %17 = math.tanh %16 : vector<8x128xf32>
    %cst_9 = arith.constant 5.000000e-01 : f32
    %18 = vector.broadcast %cst_9 : f32 to vector<8x128xf32>
    %19 = arith.mulf %18, %17 : vector<8x128xf32>
    %cst_10 = arith.constant 5.000000e-01 : f32
    %20 = vector.broadcast %cst_10 : f32 to vector<8x128xf32>
    %21 = arith.addf %19, %20 : vector<8x128xf32>
    %22 = vector.extract_strided_slice %5 {offsets = [0, 256], sizes = [8, 128], strides = [1, 1]} : vector<8x512xf32> to vector<8x128xf32>
    %cst_11 = arith.constant 5.000000e-01 : f32
    %23 = vector.broadcast %cst_11 : f32 to vector<8x128xf32>
    %24 = arith.mulf %23, %22 : vector<8x128xf32>
    %25 = math.tanh %24 : vector<8x128xf32>
    %cst_12 = arith.constant 5.000000e-01 : f32
    %26 = vector.broadcast %cst_12 : f32 to vector<8x128xf32>
    %27 = arith.mulf %26, %25 : vector<8x128xf32>
    %cst_13 = arith.constant 5.000000e-01 : f32
    %28 = vector.broadcast %cst_13 : f32 to vector<8x128xf32>
    %29 = arith.addf %27, %28 : vector<8x128xf32>
    %30 = vector.extract_strided_slice %5 {offsets = [0, 384], sizes = [8, 128], strides = [1, 1]} : vector<8x512xf32> to vector<8x128xf32>
    %cst_14 = arith.constant 5.000000e-01 : f32
    %31 = vector.broadcast %cst_14 : f32 to vector<8x128xf32>
    %32 = arith.mulf %31, %30 : vector<8x128xf32>
    %33 = math.tanh %32 : vector<8x128xf32>
    %cst_15 = arith.constant 5.000000e-01 : f32
    %34 = vector.broadcast %cst_15 : f32 to vector<8x128xf32>
    %35 = arith.mulf %34, %33 : vector<8x128xf32>
    %cst_16 = arith.constant 5.000000e-01 : f32
    %36 = vector.broadcast %cst_16 : f32 to vector<8x128xf32>
    %37 = arith.addf %35, %36 : vector<8x128xf32>
    %c0_17 = arith.constant 0 : index
    %c0_18 = arith.constant 0 : index
    %38 = vector.load %arg3[%c0_17, %c0_18] : memref<8x128xf32, #tpu.memory_space<vmem>>, vector<8x128xf32>
    %39 = arith.mulf %21, %38 : vector<8x128xf32>
    %40 = arith.mulf %13, %37 : vector<8x128xf32>
    %41 = arith.addf %39, %40 : vector<8x128xf32>
    %42 = math.tanh %41 : vector<8x128xf32>
    %43 = arith.mulf %29, %42 : vector<8x128xf32>
    %c0_19 = arith.constant 0 : index
    %c0_20 = arith.constant 0 : index
    %44 = vector.load %arg6[%c0_19, %c0_20] : memref<8x128xf32, #tpu.memory_space<vmem>>, vector<8x128xf32>
    tpu.vector_store %arg6[%c0_19, %c0_20], %43 {strides = array<i32>} : memref<8x128xf32, #tpu.memory_space<vmem>>, vector<8x128xf32>,
    %c0_21 = arith.constant 0 : index
    %c0_22 = arith.constant 0 : index
    %45 = vector.load %arg7[%c0_21, %c0_22] : memref<8x128xf32, #tpu.memory_space<vmem>>, vector<8x128xf32>
    tpu.vector_store %arg7[%c0_21, %c0_22], %41 {strides = array<i32>} : memref<8x128xf32, #tpu.memory_space<vmem>>, vector<8x128xf32>,
    return
  }
  func.func @transform_0(%arg0: i32, %arg1: i32) -> (i32, i32) {
    %c0_i32 = arith.constant 0 : i32
    %c0_i32_0 = arith.constant 0 : i32
    return %arg0, %c0_i32 : i32, i32
  }
  func.func @transform_1(%arg0: i32, %arg1: i32) -> (i32, i32) {
    %c0_i32 = arith.constant 0 : i32
    return %arg0, %arg1 : i32, i32
  }
  func.func @transform_2(%arg0: i32, %arg1: i32) -> (i32, i32) {
    %c0_i32 = arith.constant 0 : i32
    %c0_i32_0 = arith.constant 0 : i32
    return %c0_i32, %arg1 : i32, i32
  }
  func.func @transform_3(%arg0: i32, %arg1: i32) -> (i32, i32) {
    %c0_i32 = arith.constant 0 : i32
    %c0_i32_0 = arith.constant 0 : i32
    return %c0_i32, %arg1 : i32, i32
  }
  func.func @transform_4(%arg0: i32, %arg1: i32) -> (i32, i32) {
    %c0_i32 = arith.constant 0 : i32
    return %arg0, %arg1 : i32, i32
  }
  func.func @transform_5(%arg0: i32, %arg1: i32) -> (i32, i32) {
    %c0_i32 = arith.constant 0 : i32
    return %arg0, %arg1 : i32, i32
  }
}

module attributes {stable_mosaic.version = 11 : i64} {
  func.func @lstm_cell_kernel(%arg0: i32, %arg1: i32, %arg2: memref<8x256xbf16, #tpu.memory_space<vmem>>, %arg3: memref<8x128xf32, #tpu.memory_space<vmem>>, %arg4: memref<256x512xbf16, #tpu.memory_space<vmem>>, %arg5: memref<1x512xf32, #tpu.memory_space<vmem>>, %arg6: memref<8x128xf32, #tpu.memory_space<vmem>>, %arg7: memref<8x128xf32, #tpu.memory_space<vmem>>) attributes {dimension_semantics = [#tpu.dimension_semantics<parallel>, #tpu.dimension_semantics<arbitrary>], iteration_bounds = array<i64: 1, 1>, scalar_prefetch = 0 : i64, scratch_operands = 0 : i64, tpu.core_type = #tpu.core_type<tc>, window_params = [{transform_indices = @transform_0, window_bounds = array<i64: 8, 256>}, {transform_indices = @transform_1, window_bounds = array<i64: 8, 128>}, {transform_indices = @transform_2, window_bounds = array<i64: 256, 512>}, {transform_indices = @transform_3, window_bounds = array<i64: 1, 512>}, {transform_indices = @transform_4, window_bounds = array<i64: 8, 128>}, {transform_indices = @transform_5, window_bounds = array<i64: 8, 128>}]} {
    %c0 = arith.constant 0 : index
    %c0_0 = arith.constant 0 : index
    %0 = vector.load %arg2[%c0, %c0_0] : memref<8x256xbf16, #tpu.memory_space<vmem>>, vector<8x256xbf16>
    %c0_1 = arith.constant 0 : index
    %c0_2 = arith.constant 0 : index
    %1 = vector.load %arg4[%c0_1, %c0_2] : memref<256x512xbf16, #tpu.memory_space<vmem>>, vector<256x512xbf16>
    %cst = arith.constant dense<0.000000e+00> : vector<8x512xf32>
    %2 = tpu.matmul %0, %1, %cst {dimension_numbers = #tpu.dot_dimension_numbers<[1], [0], [0], [1], [0, 0, 1, 1], [], []>} : vector<8x256xbf16>, vector<256x512xbf16>, vector<8x512xf32> -> vector<8x512xf32>
    %c0_3 = arith.constant 0 : index
    %c0_4 = arith.constant 0 : index
    %3 = vector.load %arg5[%c0_3, %c0_4] : memref<1x512xf32, #tpu.memory_space<vmem>>, vector<1x512xf32>
    %4 = vector.broadcast %3 : vector<1x512xf32> to vector<8x512xf32>
    %5 = arith.addf %2, %4 : vector<8x512xf32>
    %6 = vector.extract_strided_slice %5 {offsets = [0, 0], sizes = [8, 128], strides = [1, 1]} : vector<8x512xf32> to vector<8x128xf32>
    %cst_5 = arith.constant 5.000000e-01 : f32
    %7 = vector.broadcast %cst_5 : f32 to vector<8x128xf32>
    %8 = arith.mulf %7, %6 : vector<8x128xf32>
    %9 = math.tanh %8 : vector<8x128xf32>
    %cst_6 = arith.constant 5.000000e-01 : f32
    %10 = vector.broadcast %cst_6 : f32 to vector<8x128xf32>
    %11 = arith.mulf %10, %9 : vector<8x128xf32>
    %cst_7 = arith.constant 5.000000e-01 : f32
    %12 = vector.broadcast %cst_7 : f32 to vector<8x128xf32>
    %13 = arith.addf %11, %12 : vector<8x128xf32>
    %14 = vector.extract_strided_slice %5 {offsets = [0, 128], sizes = [8, 128], strides = [1, 1]} : vector<8x512xf32> to vector<8x128xf32>
    %cst_8 = arith.constant 5.000000e-01 : f32
    %15 = vector.broadcast %cst_8 : f32 to vector<8x128xf32>
    %16 = arith.mulf %15, %14 : vector<8x128xf32>
    %17 = math.tanh %16 : vector<8x128xf32>
    %cst_9 = arith.constant 5.000000e-01 : f32
    %18 = vector.broadcast %cst_9 : f32 to vector<8x128xf32>
    %19 = arith.mulf %18, %17 : vector<8x128xf32>
    %cst_10 = arith.constant 5.000000e-01 : f32
    %20 = vector.broadcast %cst_10 : f32 to vector<8x128xf32>
    %21 = arith.addf %19, %20 : vector<8x128xf32>
    %22 = vector.extract_strided_slice %5 {offsets = [0, 256], sizes = [8, 128], strides = [1, 1]} : vector<8x512xf32> to vector<8x128xf32>
    %cst_11 = arith.constant 5.000000e-01 : f32
    %23 = vector.broadcast %cst_11 : f32 to vector<8x128xf32>
    %24 = arith.mulf %23, %22 : vector<8x128xf32>
    %25 = math.tanh %24 : vector<8x128xf32>
    %cst_12 = arith.constant 5.000000e-01 : f32
    %26 = vector.broadcast %cst_12 : f32 to vector<8x128xf32>
    %27 = arith.mulf %26, %25 : vector<8x128xf32>
    %cst_13 = arith.constant 5.000000e-01 : f32
    %28 = vector.broadcast %cst_13 : f32 to vector<8x128xf32>
    %29 = arith.addf %27, %28 : vector<8x128xf32>
    %30 = vector.extract_strided_slice %5 {offsets = [0, 384], sizes = [8, 128], strides = [1, 1]} : vector<8x512xf32> to vector<8x128xf32>
    %cst_14 = arith.constant 5.000000e-01 : f32
    %31 = vector.broadcast %cst_14 : f32 to vector<8x128xf32>
    %32 = arith.mulf %31, %30 : vector<8x128xf32>
    %33 = math.tanh %32 : vector<8x128xf32>
    %cst_15 = arith.constant 5.000000e-01 : f32
    %34 = vector.broadcast %cst_15 : f32 to vector<8x128xf32>
    %35 = arith.mulf %34, %33 : vector<8x128xf32>
    %cst_16 = arith.constant 5.000000e-01 : f32
    %36 = vector.broadcast %cst_16 : f32 to vector<8x128xf32>
    %37 = arith.addf %35, %36 : vector<8x128xf32>
    %c0_17 = arith.constant 0 : index
    %c0_18 = arith.constant 0 : index
    %38 = vector.load %arg3[%c0_17, %c0_18] : memref<8x128xf32, #tpu.memory_space<vmem>>, vector<8x128xf32>
    %39 = arith.mulf %21, %38 : vector<8x128xf32>
    %40 = arith.mulf %13, %37 : vector<8x128xf32>
    %41 = arith.addf %39, %40 : vector<8x128xf32>
    %42 = math.tanh %41 : vector<8x128xf32>
    %43 = arith.mulf %29, %42 : vector<8x128xf32>
    %c0_19 = arith.constant 0 : index
    %c0_20 = arith.constant 0 : index
    %44 = vector.load %arg6[%c0_19, %c0_20] : memref<8x128xf32, #tpu.memory_space<vmem>>, vector<8x128xf32>
    tpu.vector_store %arg6[%c0_19, %c0_20], %43 {strides = array<i32>} : memref<8x128xf32, #tpu.memory_space<vmem>>, vector<8x128xf32>,
    %c0_21 = arith.constant 0 : index
    %c0_22 = arith.constant 0 : index
    %45 = vector.load %arg7[%c0_21, %c0_22] : memref<8x128xf32, #tpu.memory_space<vmem>>, vector<8x128xf32>
    tpu.vector_store %arg7[%c0_21, %c0_22], %41 {strides = array<i32>} : memref<8x128xf32, #tpu.memory_space<vmem>>, vector<8x128xf32>,
    return
  }
  func.func @transform_0(%arg0: i32, %arg1: i32) -> (i32, i32) {
    %c0_i32 = arith.constant 0 : i32
    %c0_i32_0 = arith.constant 0 : i32
    return %arg0, %c0_i32 : i32, i32
  }
  func.func @transform_1(%arg0: i32, %arg1: i32) -> (i32, i32) {
    %c0_i32 = arith.constant 0 : i32
    return %arg0, %arg1 : i32, i32
  }
  func.func @transform_2(%arg0: i32, %arg1: i32) -> (i32, i32) {
    %c0_i32 = arith.constant 0 : i32
    %c0_i32_0 = arith.constant 0 : i32
    return %c0_i32, %arg1 : i32, i32
  }
  func.func @transform_3(%arg0: i32, %arg1: i32) -> (i32, i32) {
    %c0_i32 = arith.constant 0 : i32
    %c0_i32_0 = arith.constant 0 : i32
    return %c0_i32, %arg1 : i32, i32
  }
  func.func @transform_4(%arg0: i32, %arg1: i32) -> (i32, i32) {
    %c0_i32 = arith.constant 0 : i32
    return %arg0, %arg1 : i32, i32
  }
  func.func @transform_5(%arg0: i32, %arg1: i32) -> (i32, i32) {
    %c0_i32 = arith.constant 0 : i32
    return %arg0, %arg1 : i32, i32
  }
}

</mosaic_0001>

<llo_original>
// kernel: tpu_custom_call.1
$region0: #{tpu_custom_call.1}
  #allocation0 [shape = 'u32[]', space=smem, size = 0x4, offset = 0x4, fixed_abs, tag = 'smem constant byte address 0x4 - core index']
  #allocation1 [shape = 'u32[144,128]{1,0:T(1,128)}', space=vmem, size = 0x12000, scoped, tag = 'internal scratch']
  %s0 = inlined_call_operand.hbm [shape: bf16[8,256], index: 0, kind: input, shape index: {}]
  %s1 = inlined_call_operand.hbm [shape: f32[8,128], index: 1, kind: input, shape index: {}]
  %s2 = inlined_call_operand.hbm [shape: bf16[256,512], index: 2, kind: input, shape index: {}]
  %s3 = inlined_call_operand.vmem [shape: f32[1,512], index: 3, kind: input, shape index: {}]
  %s4 = inlined_call_operand.hbm [shape: f32[8,128], index: 4, kind: output, shape index: {0}]
  %s5 = inlined_call_operand.hbm [shape: f32[8,128], index: 5, kind: output, shape index: {1}]
  %6 = xla_tuple %s4, %s5
  %s7 = sld [smem:[#allocation0]]
  $region46: #{tpu_custom_call.1} parent=0
    _
  %s9 = ssub.s32 1, %s7
  %s10 = scalar_select 0, %s9, %s7
  $region1: #{tpu_custom_call.1} parent=0
    #allocation2 [shape = 'u8[4096]{0}', space=vmem, size = 0x1000, scoped, tag = 'input window, operand 0, single buffered']
    #allocation3 [shape = 's32[1]{0}', space=sflag, size = 0x4, scoped, tag = 'scoped memory for tpu_custom_call.1']
    #allocation4 [shape = 's32[1]{0}', space=sflag, size = 0x4, scoped, tag = 'scoped memory for tpu_custom_call.1']
    #allocation5 [shape = 'u8[4096]{0}', space=vmem, size = 0x1000, scoped, tag = 'input window, operand 1, single buffered']
    #allocation6 [shape = 's32[1]{0}', space=sflag, size = 0x4, scoped, tag = 'scoped memory for tpu_custom_call.1']
    #allocation7 [shape = 'u8[262144]{0}', space=vmem, size = 0x40000, scoped, tag = 'input window, operand 2, single buffered']
    #allocation8 [shape = 'u8[4096]{0}', space=vmem, size = 0x1000, scoped, tag = 'output window, operand 0, single buffered']
    #allocation9 [shape = 'u8[4096]{0}', space=vmem, size = 0x1000, scoped, tag = 'output window, operand 1, single buffered']
    #allocation10 [shape = 's32[1]{0}', space=sflag, size = 0x4, scoped, tag = 'scoped memory for tpu_custom_call.1']
    %11 = vsyncpa [#allocation3], 0
    %12 = vsyncpa [#allocation6], 0
    %13 = vsyncpa [#allocation4], 0
    %14 = vsyncpa [#allocation10], 0
    // Predicated region
    $region2: #{tpu_custom_call.1} parent=1 // pred_check
      _
    $region3: #{tpu_custom_call.1} parent=1 // pred_check_branch
      %16 = sbr.rel (0) target = $region5
    $region4: #{tpu_custom_call.1} parent=1 // pred_region
      %s18 = ssub.s32 128, 128
      %19 = vsyncadd [#allocation3], %s18
      %s21 = sshll.u32 [#allocation2], 4
      %s22 = int_to_ptr.vmem [resolvable:$true] %s21
      %24 = dma.hbm_to_vmem [thread:$0]  %s0, 128, %s22, [#allocation3]
    $region5: #{tpu_custom_call.1} parent=1 // pred_fallthru
      _
    // Predicated region
    $region6: #{tpu_custom_call.1} parent=1 // pred_check
      _
    $region7: #{tpu_custom_call.1} parent=1 // pred_check_branch
      %26 = sbr.rel (0) target = $region9
    $region8: #{tpu_custom_call.1} parent=1 // pred_region
      %s28 = ssub.s32 128, 128
      %29 = vsyncadd [#allocation6], %s28
      %s31 = sshll.u32 [#allocation5], 4
      %s32 = int_to_ptr.vmem [resolvable:$true] %s31
      %34 = dma.hbm_to_vmem [thread:$0]  %s1, 128, %s32, [#allocation6]
    $region9: #{tpu_custom_call.1} parent=1 // pred_fallthru
      _
    // Predicated region
    $region10: #{tpu_custom_call.1} parent=1 // pred_check
      _
    $region11: #{tpu_custom_call.1} parent=1 // pred_check_branch
      %36 = sbr.rel (0) target = $region13
    $region12: #{tpu_custom_call.1} parent=1 // pred_region
      %s38 = ssub.s32 8192, 8192
      %39 = vsyncadd [#allocation6], %s38
      %s40 = sshll.u32 [#allocation7], 4
      %s41 = int_to_ptr.vmem [resolvable:$true] %s40
      %46 = dma.hbm_to_vmem [thread:$0]  %s2, 8192, %s41, [#allocation6], 256, 256, 16
    $region13: #{tpu_custom_call.1} parent=1 // pred_fallthru
      _
    // Predicated region
    $region14: #{tpu_custom_call.1} parent=1 // pred_check
      _
    $region15: #{tpu_custom_call.1} parent=1 // pred_check_branch
      %48 = sbr.rel (0) target = $region17
    $region16: #{tpu_custom_call.1} parent=1 // pred_region
      _
    $region17: #{tpu_custom_call.1} parent=1 // pred_fallthru
      _
    // Predicated region
    $region18: #{tpu_custom_call.1} parent=1 // pred_check
      _
    $region19: #{tpu_custom_call.1} parent=1 // pred_check_branch
      %50 = sbr.rel (0) target = $region21
    $region20: #{tpu_custom_call.1} parent=1 // pred_region
      %51 = dma.done [#allocation3], 128
    $region21: #{tpu_custom_call.1} parent=1 // pred_fallthru
      _
    // Predicated region
    $region22: #{tpu_custom_call.1} parent=1 // pred_check
      _
    $region23: #{tpu_custom_call.1} parent=1 // pred_check_branch
      %53 = sbr.rel (0) target = $region25
    $region24: #{tpu_custom_call.1} parent=1 // pred_region
      %54 = dma.done [#allocation6], 128
    $region25: #{tpu_custom_call.1} parent=1 // pred_fallthru
      _
    // Predicated region
    $region26: #{tpu_custom_call.1} parent=1 // pred_check
      _
    $region27: #{tpu_custom_call.1} parent=1 // pred_check_branch
      %56 = sbr.rel (0) target = $region29
    $region28: #{tpu_custom_call.1} parent=1 // pred_region
      %57 = dma.done [#allocation6], 8192
    $region29: #{tpu_custom_call.1} parent=1 // pred_fallthru
      _
    %v58 = vld [vmem:[#allocation2] sm:$0xff]
    %v59 = vld [vmem:[#allocation7] sm:$0xff]
    %v60 = vld [vmem:[#allocation7 + $0x8] sm:$0xff]
    %v61 = vld [vmem:[#allocation7 + $0x10] sm:$0xff]
    %v62 = vld [vmem:[#allocation7 + $0x18] sm:$0xff]
    %v63 = vld [vmem:[#allocation7 + $0x20] sm:$0xff]
    %v64 = vld [vmem:[#allocation7 + $0x28] sm:$0xff]
    %v65 = vld [vmem:[#allocation7 + $0x30] sm:$0xff]
    %v66 = vld [vmem:[#allocation7 + $0x38] sm:$0xff]
    %v67 = vld [vmem:[#allocation7 + $0x40] sm:$0xff]
    %v68 = vld [vmem:[#allocation7 + $0x48] sm:$0xff]
    %v69 = vld [vmem:[#allocation7 + $0x50] sm:$0xff]
    %v70 = vld [vmem:[#allocation7 + $0x58] sm:$0xff]
    %v71 = vld [vmem:[#allocation7 + $0x60] sm:$0xff]
    %v72 = vld [vmem:[#allocation7 + $0x68] sm:$0xff]
    %v73 = vld [vmem:[#allocation7 + $0x70] sm:$0xff]
    %v74 = vld [vmem:[#allocation7 + $0x78] sm:$0xff]
    %v75 = vld [vmem:[#allocation7 + $0x80] sm:$0xff]
    %v76 = vld [vmem:[#allocation7 + $0x88] sm:$0xff]
    %v77 = vld [vmem:[#allocation7 + $0x90] sm:$0xff]
    %v78 = vld [vmem:[#allocation7 + $0x98] sm:$0xff]
    %v79 = vld [vmem:[#allocation7 + $0xa0] sm:$0xff]
    %v80 = vld [vmem:[#allocation7 + $0xa8] sm:$0xff]
    %v81 = vld [vmem:[#allocation7 + $0xb0] sm:$0xff]
    %v82 = vld [vmem:[#allocation7 + $0xb8] sm:$0xff]
    %v83 = vld [vmem:[#allocation7 + $0xc0] sm:$0xff]
    %v84 = vld [vmem:[#allocation7 + $0xc8] sm:$0xff]
    %v85 = vld [vmem:[#allocation7 + $0xd0] sm:$0xff]
    %v86 = vld [vmem:[#allocation7 + $0xd8] sm:$0xff]
    %v87 = vld [vmem:[#allocation7 + $0xe0] sm:$0xff]
    %v88 = vld [vmem:[#allocation7 + $0xe8] sm:$0xff]
    %v89 = vld [vmem:[#allocation7 + $0xf0] sm:$0xff]
    %v90 = vld [vmem:[#allocation7 + $0xf8] sm:$0xff]
    %v91 = vld [vmem:[#allocation7 + $0x100] sm:$0xff]
    %v92 = vld [vmem:[#allocation7 + $0x108] sm:$0xff]
    %v93 = vld [vmem:[#allocation7 + $0x110] sm:$0xff]
    %v94 = vld [vmem:[#allocation7 + $0x118] sm:$0xff]
    %v95 = vld [vmem:[#allocation7 + $0x120] sm:$0xff]
    %v96 = vld [vmem:[#allocation7 + $0x128] sm:$0xff]
    %v97 = vld [vmem:[#allocation7 + $0x130] sm:$0xff]
    %v98 = vld [vmem:[#allocation7 + $0x138] sm:$0xff]
    %v99 = vld [vmem:[#allocation7 + $0x140] sm:$0xff]
    %v100 = vld [vmem:[#allocation7 + $0x148] sm:$0xff]
    %v101 = vld [vmem:[#allocation7 + $0x150] sm:$0xff]
    %v102 = vld [vmem:[#allocation7 + $0x158] sm:$0xff]
    %v103 = vld [vmem:[#allocation7 + $0x160] sm:$0xff]
    %v104 = vld [vmem:[#allocation7 + $0x168] sm:$0xff]
    %v105 = vld [vmem:[#allocation7 + $0x170] sm:$0xff]
    %v106 = vld [vmem:[#allocation7 + $0x178] sm:$0xff]
    %v107 = vld [vmem:[#allocation7 + $0x180] sm:$0xff]
    %v108 = vld [vmem:[#allocation7 + $0x188] sm:$0xff]
    %v109 = vld [vmem:[#allocation7 + $0x190] sm:$0xff]
    %v110 = vld [vmem:[#allocation7 + $0x198] sm:$0xff]
    %v111 = vld [vmem:[#allocation7 + $0x1a0] sm:$0xff]
    %v112 = vld [vmem:[#allocation7 + $0x1a8] sm:$0xff]
    %v113 = vld [vmem:[#allocation7 + $0x1b0] sm:$0xff]
    %v114 = vld [vmem:[#allocation7 + $0x1b8] sm:$0xff]
    %v115 = vld [vmem:[#allocation7 + $0x1c0] sm:$0xff]
    %v116 = vld [vmem:[#allocation7 + $0x1c8] sm:$0xff]
    %v117 = vld [vmem:[#allocation7 + $0x1d0] sm:$0xff]
    %v118 = vld [vmem:[#allocation7 + $0x1d8] sm:$0xff]
    %v119 = vld [vmem:[#allocation7 + $0x1e0] sm:$0xff]
    %v120 = vld [vmem:[#allocation7 + $0x1e8] sm:$0xff]
    %v121 = vld [vmem:[#allocation7 + $0x1f0] sm:$0xff]
    %v122 = vld [vmem:[#allocation7 + $0x1f8] sm:$0xff]
    %v123 = vld [vmem:[%s3] sm:$0xf]
    %v125 = vlaneseq
    %v126 = vshrl.u32 %v125, 7
    %v127 = vsub.s32 0, %v126
    %v128 = vrot.slane %v123, %v127
    %v129 = vlaneseq
    %v130 = vshrl.u32 %v129, 7
    %v131 = vsub.s32 1, %v130
    %v132 = vrot.slane %v123, %v131
    %v133 = vlaneseq
    %v134 = vshrl.u32 %v133, 7
    %v135 = vsub.s32 2, %v134
    %v136 = vrot.slane %v123, %v135
    %v137 = vlaneseq
    %v138 = vshrl.u32 %v137, 7
    %v139 = vsub.s32 3, %v138
    %v140 = vrot.slane %v123, %v139
    %v146 = vunpack.c.l.b16 %v58
    %v147 = vunpack.c.h.b16 %v58
    %v148 = vpack.c.b16 %v146, %v146
    %v149 = vpack.c.b16 %v147, %v147
    %v216 = vunpack.c.l.b16 %v59
    %v217 = vunpack.c.h.b16 %v59
    %v218 = vunpack.c.l.b16 %v60
    %v219 = vunpack.c.h.b16 %v60
    %v220 = vunpack.c.l.b16 %v61
    %v221 = vunpack.c.h.b16 %v61
    %v222 = vunpack.c.l.b16 %v62
    %v223 = vunpack.c.h.b16 %v62
    %v224 = vunpack.c.l.b16 %v63
    %v225 = vunpack.c.h.b16 %v63
    %v226 = vunpack.c.l.b16 %v64
    %v227 = vunpack.c.h.b16 %v64
    %v228 = vunpack.c.l.b16 %v65
    %v229 = vunpack.c.h.b16 %v65
    %v230 = vunpack.c.l.b16 %v66
    %v231 = vunpack.c.h.b16 %v66
    %v232 = vunpack.c.l.b16 %v67
    %v233 = vunpack.c.h.b16 %v67
    %v234 = vunpack.c.l.b16 %v68
    %v235 = vunpack.c.h.b16 %v68
    %v236 = vunpack.c.l.b16 %v69
    %v237 = vunpack.c.h.b16 %v69
    %v238 = vunpack.c.l.b16 %v70
    %v239 = vunpack.c.h.b16 %v70
    %v240 = vunpack.c.l.b16 %v71
    %v241 = vunpack.c.h.b16 %v71
    %v242 = vunpack.c.l.b16 %v72
    %v243 = vunpack.c.h.b16 %v72
    %v244 = vunpack.c.l.b16 %v73
    %v245 = vunpack.c.h.b16 %v73
    %v246 = vunpack.c.l.b16 %v74
    %v247 = vunpack.c.h.b16 %v74
    %v248 = vunpack.c.l.b16 %v75
    %v249 = vunpack.c.h.b16 %v75
    %v250 = vunpack.c.l.b16 %v76
    %v251 = vunpack.c.h.b16 %v76
    %v252 = vunpack.c.l.b16 %v77
    %v253 = vunpack.c.h.b16 %v77
    %v254 = vunpack.c.l.b16 %v78
    %v255 = vunpack.c.h.b16 %v78
    %v256 = vunpack.c.l.b16 %v79
    %v257 = vunpack.c.h.b16 %v79
    %v258 = vunpack.c.l.b16 %v80
    %v259 = vunpack.c.h.b16 %v80
    %v260 = vunpack.c.l.b16 %v81
    %v261 = vunpack.c.h.b16 %v81
    %v262 = vunpack.c.l.b16 %v82
    %v263 = vunpack.c.h.b16 %v82
    %v264 = vunpack.c.l.b16 %v83
    %v265 = vunpack.c.h.b16 %v83
    %v266 = vunpack.c.l.b16 %v84
    %v267 = vunpack.c.h.b16 %v84
    %v268 = vunpack.c.l.b16 %v85
    %v269 = vunpack.c.h.b16 %v85
    %v270 = vunpack.c.l.b16 %v86
    %v271 = vunpack.c.h.b16 %v86
    %v272 = vunpack.c.l.b16 %v87
    %v273 = vunpack.c.h.b16 %v87
    %v274 = vunpack.c.l.b16 %v88
    %v275 = vunpack.c.h.b16 %v88
    %v276 = vunpack.c.l.b16 %v89
    %v277 = vunpack.c.h.b16 %v89
    %v278 = vunpack.c.l.b16 %v90
    %v279 = vunpack.c.h.b16 %v90
    %v280 = vunpack.c.l.b16 %v91
    %v281 = vunpack.c.h.b16 %v91
    %v282 = vunpack.c.l.b16 %v92
    %v283 = vunpack.c.h.b16 %v92
    %v284 = vunpack.c.l.b16 %v93
    %v285 = vunpack.c.h.b16 %v93
    %v286 = vunpack.c.l.b16 %v94
    %v287 = vunpack.c.h.b16 %v94
    %v288 = vunpack.c.l.b16 %v95
    %v289 = vunpack.c.h.b16 %v95
    %v290 = vunpack.c.l.b16 %v96
    %v291 = vunpack.c.h.b16 %v96
    %v292 = vunpack.c.l.b16 %v97
    %v293 = vunpack.c.h.b16 %v97
    %v294 = vunpack.c.l.b16 %v98
    %v295 = vunpack.c.h.b16 %v98
    %v296 = vunpack.c.l.b16 %v99
    %v297 = vunpack.c.h.b16 %v99
    %v298 = vunpack.c.l.b16 %v100
    %v299 = vunpack.c.h.b16 %v100
    %v300 = vunpack.c.l.b16 %v101
    %v301 = vunpack.c.h.b16 %v101
    %v302 = vunpack.c.l.b16 %v102
    %v303 = vunpack.c.h.b16 %v102
    %v304 = vunpack.c.l.b16 %v103
    %v305 = vunpack.c.h.b16 %v103
    %v306 = vunpack.c.l.b16 %v104
    %v307 = vunpack.c.h.b16 %v104
    %v308 = vunpack.c.l.b16 %v105
    %v309 = vunpack.c.h.b16 %v105
    %v310 = vunpack.c.l.b16 %v106
    %v311 = vunpack.c.h.b16 %v106
    %v312 = vunpack.c.l.b16 %v107
    %v313 = vunpack.c.h.b16 %v107
    %v314 = vunpack.c.l.b16 %v108
    %v315 = vunpack.c.h.b16 %v108
    %v316 = vunpack.c.l.b16 %v109
    %v317 = vunpack.c.h.b16 %v109
    %v318 = vunpack.c.l.b16 %v110
    %v319 = vunpack.c.h.b16 %v110
    %v320 = vunpack.c.l.b16 %v111
    %v321 = vunpack.c.h.b16 %v111
    %v322 = vunpack.c.l.b16 %v112
    %v323 = vunpack.c.h.b16 %v112
    %v324 = vunpack.c.l.b16 %v113
    %v325 = vunpack.c.h.b16 %v113
    %v326 = vunpack.c.l.b16 %v114
    %v327 = vunpack.c.h.b16 %v114
    %v328 = vunpack.c.l.b16 %v115
    %v329 = vunpack.c.h.b16 %v115
    %v330 = vunpack.c.l.b16 %v116
    %v331 = vunpack.c.h.b16 %v116
    %v332 = vunpack.c.l.b16 %v117
    %v333 = vunpack.c.h.b16 %v117
    %v334 = vunpack.c.l.b16 %v118
    %v335 = vunpack.c.h.b16 %v118
    %v336 = vunpack.c.l.b16 %v119
    %v337 = vunpack.c.h.b16 %v119
    %v338 = vunpack.c.l.b16 %v120
    %v339 = vunpack.c.h.b16 %v120
    %v340 = vunpack.c.l.b16 %v121
    %v341 = vunpack.c.h.b16 %v121
    %v342 = vunpack.c.l.b16 %v122
    %v343 = vunpack.c.h.b16 %v122
    %v344 = vpack.c.b16 %v220, %v216
    %v345 = vpack.c.b16 %v221, %v217
    %v346 = vpack.c.b16 %v222, %v218
    %v347 = vpack.c.b16 %v223, %v219
    %v348 = vpack.c.b16 %v228, %v224
    %v349 = vpack.c.b16 %v229, %v225
    %v350 = vpack.c.b16 %v230, %v226
    %v351 = vpack.c.b16 %v231, %v227
    %v352 = vpack.c.b16 %v236, %v232
    %v353 = vpack.c.b16 %v237, %v233
    %v354 = vpack.c.b16 %v238, %v234
    %v355 = vpack.c.b16 %v239, %v235
    %v356 = vpack.c.b16 %v244, %v240
    %v357 = vpack.c.b16 %v245, %v241
    %v358 = vpack.c.b16 %v246, %v242
    %v359 = vpack.c.b16 %v247, %v243
    %v360 = vpack.c.b16 %v252, %v248
    %v361 = vpack.c.b16 %v253, %v249
    %v362 = vpack.c.b16 %v254, %v250
    %v363 = vpack.c.b16 %v255, %v251
    %v364 = vpack.c.b16 %v260, %v256
    %v365 = vpack.c.b16 %v261, %v257
    %v366 = vpack.c.b16 %v262, %v258
    %v367 = vpack.c.b16 %v263, %v259
    %v368 = vpack.c.b16 %v268, %v264
    %v369 = vpack.c.b16 %v269, %v265
    %v370 = vpack.c.b16 %v270, %v266
    %v371 = vpack.c.b16 %v271, %v267
    %v372 = vpack.c.b16 %v276, %v272
    %v373 = vpack.c.b16 %v277, %v273
    %v374 = vpack.c.b16 %v278, %v274
    %v375 = vpack.c.b16 %v279, %v275
    %v376 = vpack.c.b16 %v284, %v280
    %v377 = vpack.c.b16 %v285, %v281
    %v378 = vpack.c.b16 %v286, %v282
    %v379 = vpack.c.b16 %v287, %v283
    %v380 = vpack.c.b16 %v292, %v288
    %v381 = vpack.c.b16 %v293, %v289
    %v382 = vpack.c.b16 %v294, %v290
    %v383 = vpack.c.b16 %v295, %v291
    %v384 = vpack.c.b16 %v300, %v296
    %v385 = vpack.c.b16 %v301, %v297
    %v386 = vpack.c.b16 %v302, %v298
    %v387 = vpack.c.b16 %v303, %v299
    %v388 = vpack.c.b16 %v308, %v304
    %v389 = vpack.c.b16 %v309, %v305
    %v390 = vpack.c.b16 %v310, %v306
    %v391 = vpack.c.b16 %v311, %v307
    %v392 = vpack.c.b16 %v316, %v312
    %v393 = vpack.c.b16 %v317, %v313
    %v394 = vpack.c.b16 %v318, %v314
    %v395 = vpack.c.b16 %v319, %v315
    %v396 = vpack.c.b16 %v324, %v320
    %v397 = vpack.c.b16 %v325, %v321
    %v398 = vpack.c.b16 %v326, %v322
    %v399 = vpack.c.b16 %v327, %v323
    %v400 = vpack.c.b16 %v332, %v328
    %v401 = vpack.c.b16 %v333, %v329
    %v402 = vpack.c.b16 %v334, %v330
    %v403 = vpack.c.b16 %v335, %v331
    %v404 = vpack.c.b16 %v340, %v336
    %v405 = vpack.c.b16 %v341, %v337
    %v406 = vpack.c.b16 %v342, %v338
    %v407 = vpack.c.b16 %v343, %v339
    %472 = vmatprep.subr.bf16.mxu0 %v373
    %473 = vmatpush1.bf16.msra.mxu0 %v372
    %474 = vmatprep.subr.bf16.mxu0 %v369
    %475 = vmatpush1.bf16.msra.mxu0 %v368
    %476 = vmatprep.subr.bf16.mxu0 %v365
    %477 = vmatpush1.bf16.msra.mxu0 %v364
    %478 = vmatprep.subr.bf16.mxu0 %v361
    %479 = vmatpush1.bf16.msra.mxu0 %v360
    %480 = vmatprep.subr.bf16.mxu0 %v357
    %481 = vmatpush1.bf16.msra.mxu0 %v356
    %482 = vmatprep.subr.bf16.mxu0 %v353
    %483 = vmatpush1.bf16.msra.mxu0 %v352
    %484 = vmatprep.subr.bf16.mxu0 %v349
    %485 = vmatpush1.bf16.msra.mxu0 %v348
    %486 = vmatprep.subr.bf16.mxu0 %v345
    %487 = vmatpush1.bf16.msra.mxu0 %v344
    %488 = vmatprep.subr.bf16.mxu0 %v405
    %489 = vmatpush2.bf16.msra.mxu0 %v404
    %490 = vmatprep.subr.bf16.mxu0 %v401
    %491 = vmatpush2.bf16.msra.mxu0 %v400
    %492 = vmatprep.subr.bf16.mxu0 %v397
    %493 = vmatpush2.bf16.msra.mxu0 %v396
    %494 = vmatprep.subr.bf16.mxu0 %v393
    %495 = vmatpush2.bf16.msra.mxu0 %v392
    %496 = vmatprep.subr.bf16.mxu0 %v389
    %497 = vmatpush2.bf16.msra.mxu0 %v388
    %498 = vmatprep.subr.bf16.mxu0 %v385
    %499 = vmatpush2.bf16.msra.mxu0 %v384
    %500 = vmatprep.subr.bf16.mxu0 %v381
    %501 = vmatpush2.bf16.msra.mxu0 %v380
    %502 = vmatprep.subr.bf16.mxu0 %v377
    %503 = vmatpush2.bf16.msra.mxu0 %v376
    %504 = vmatprep.mubr.bf16.mxu0 %v149
    %505 = vmatmul.mubr.bf16.gmra.mxu0 %v148
    %v506 = vpop.f32.mrf.mxu0
    %v507 = vadd.f32 %v128, %v506
    %v508 = vpop.f32.mrf.mxu0
    %v509 = vadd.f32 %v132, %v508
    %v510 = vpop.f32.mrf.mxu0
    %v511 = vpop.f32.mrf.mxu0
    %512 = vdwg.mxu0
    %513 = vmatprep.subr.bf16.mxu0 %v375
    %514 = vmatpush1.bf16.msra.mxu0 %v374
    %515 = vmatprep.subr.bf16.mxu0 %v371
    %516 = vmatpush1.bf16.msra.mxu0 %v370
    %517 = vmatprep.subr.bf16.mxu0 %v367
    %518 = vmatpush1.bf16.msra.mxu0 %v366
    %519 = vmatprep.subr.bf16.mxu0 %v363
    %520 = vmatpush1.bf16.msra.mxu0 %v362
    %521 = vmatprep.subr.bf16.mxu0 %v359
    %522 = vmatpush1.bf16.msra.mxu0 %v358
    %523 = vmatprep.subr.bf16.mxu0 %v355
    %524 = vmatpush1.bf16.msra.mxu0 %v354
    %525 = vmatprep.subr.bf16.mxu0 %v351
    %526 = vmatpush1.bf16.msra.mxu0 %v350
    %527 = vmatprep.subr.bf16.mxu0 %v347
    %528 = vmatpush1.bf16.msra.mxu0 %v346
    %529 = vmatprep.subr.bf16.mxu0 %v407
    %530 = vmatpush2.bf16.msra.mxu0 %v406
    %531 = vmatprep.subr.bf16.mxu0 %v403
    %532 = vmatpush2.bf16.msra.mxu0 %v402
    %533 = vmatprep.subr.bf16.mxu0 %v399
    %534 = vmatpush2.bf16.msra.mxu0 %v398
    %535 = vmatprep.subr.bf16.mxu0 %v395
    %536 = vmatpush2.bf16.msra.mxu0 %v394
    %537 = vmatprep.subr.bf16.mxu0 %v391
    %538 = vmatpush2.bf16.msra.mxu0 %v390
    %539 = vmatprep.subr.bf16.mxu0 %v387
    %540 = vmatpush2.bf16.msra.mxu0 %v386
    %541 = vmatprep.subr.bf16.mxu0 %v383
    %542 = vmatpush2.bf16.msra.mxu0 %v382
    %543 = vmatprep.subr.bf16.mxu0 %v379
    %544 = vmatpush2.bf16.msra.mxu0 %v378
    %545 = vmatprep.mubr.bf16.mxu0 %v149
    %546 = vmatmul.mubr.bf16.gmra.mxu0 %v148
    %v547 = vpop.f32.mrf.mxu0
    %v548 = vadd.f32 %v136, %v547
    %v549 = vpop.f32.mrf.mxu0
    %v550 = vadd.f32 %v140, %v549
    %v551 = vpop.f32.mrf.mxu0
    %v552 = vpop.f32.mrf.mxu0
    %553 = vdwg.mxu0
    %v554 = vmul.f32 %v507, 0.5
    %v555 = vtanh.pop %v554
    %v556 = vmul.f32 %v555, 0.5
    %v557 = vadd.f32 %v556, 0.5
    %v558 = vmul.f32 %v509, 0.5
    %v559 = vtanh.pop %v558
    %v560 = vmul.f32 %v559, 0.5
    %v561 = vadd.f32 %v560, 0.5
    %v562 = vmul.f32 %v548, 0.5
    %v563 = vtanh.pop %v562
    %v564 = vmul.f32 %v563, 0.5
    %v565 = vadd.f32 %v564, 0.5
    %v566 = vmul.f32 %v550, 0.5
    %v567 = vtanh.pop %v566
    %v568 = vmul.f32 %v567, 0.5
    %v569 = vadd.f32 %v568, 0.5
    %v570 = vld [vmem:[#allocation5] sm:$0xff]
    %v571 = vmul.f32 %v561, %v570
    %v572 = vmul.f32 %v557, %v569
    %v573 = vadd.f32 %v571, %v572
    %v574 = vtanh.pop %v573
    %v575 = vmul.f32 %v565, %v574
    %576 = vst [vmem:[#allocation8] sm:$0xff] %v575
    %577 = vst [vmem:[#allocation9] sm:$0xff] %v573
    // Predicated region
    $region30: #{tpu_custom_call.1} parent=1 // pred_check
      _
    $region31: #{tpu_custom_call.1} parent=1 // pred_check_branch
      %579 = sbr.rel (0) target = $region33
    $region32: #{tpu_custom_call.1} parent=1 // pred_region
      %s581 = ssub.s32 128, 128
      %582 = vsyncadd [#allocation4], %s581
      %s584 = sshll.u32 [#allocation8], 4
      %s585 = int_to_ptr.vmem [resolvable:$true] %s584
      %587 = dma.vmem_to_hbm [thread:$0]  %s585, 128, %s4, [#allocation4]
    $region33: #{tpu_custom_call.1} parent=1 // pred_fallthru
      _
    // Predicated region
    $region34: #{tpu_custom_call.1} parent=1 // pred_check
      _
    $region35: #{tpu_custom_call.1} parent=1 // pred_check_branch
      %589 = sbr.rel (0) target = $region37
    $region36: #{tpu_custom_call.1} parent=1 // pred_region
      %s591 = ssub.s32 128, 128
      %592 = vsyncadd [#allocation10], %s591
      %s594 = sshll.u32 [#allocation9], 4
      %s595 = int_to_ptr.vmem [resolvable:$true] %s594
      %597 = dma.vmem_to_hbm [thread:$0]  %s595, 128, %s5, [#allocation10]
    $region37: #{tpu_custom_call.1} parent=1 // pred_fallthru
      _
    // Predicated region
    $region38: #{tpu_custom_call.1} parent=1 // pred_check
      _
    $region39: #{tpu_custom_call.1} parent=1 // pred_check_branch
      %599 = sbr.rel (0) target = $region41
    $region40: #{tpu_custom_call.1} parent=1 // pred_region
      %600 = dma.done [#allocation4], 128
    $region41: #{tpu_custom_call.1} parent=1 // pred_fallthru
      _
    // Predicated region
    $region42: #{tpu_custom_call.1} parent=1 // pred_check
      _
    $region43: #{tpu_custom_call.1} parent=1 // pred_check_branch
      %602 = sbr.rel (0) target = $region45
    $region44: #{tpu_custom_call.1} parent=1 // pred_region
      %603 = dma.done [#allocation10], 128
    $region45: #{tpu_custom_call.1} parent=1 // pred_fallthru
      _
    %604 = vsyncpa [#allocation3], 1
    %605 = vsyncpa [#allocation6], 1
    %606 = vsyncpa [#allocation4], 1
    %607 = vsyncpa [#allocation10], 1

// kernel: tpu_custom_call.1
$region0: #{tpu_custom_call.1}
  #allocation0 [shape = 'u32[]', space=smem, size = 0x4, offset = 0x4, fixed_abs, tag = 'smem constant byte address 0x4 - core index']
  #allocation1 [shape = 'u32[144,128]{1,0:T(1,128)}', space=vmem, size = 0x12000, scoped, tag = 'internal scratch']
  %s0 = inlined_call_operand.hbm [shape: bf16[8,256], index: 0, kind: input, shape index: {}]
  %s1 = inlined_call_operand.hbm [shape: f32[8,128], index: 1, kind: input, shape index: {}]
  %s2 = inlined_call_operand.hbm [shape: bf16[256,512], index: 2, kind: input, shape index: {}]
  %s3 = inlined_call_operand.vmem [shape: f32[1,512], index: 3, kind: input, shape index: {}]
  %s4 = inlined_call_operand.hbm [shape: f32[8,128], index: 4, kind: output, shape index: {0}]
  %s5 = inlined_call_operand.hbm [shape: f32[8,128], index: 5, kind: output, shape index: {1}]
  %6 = xla_tuple %s4, %s5
  %s7 = sld [smem:[#allocation0]]
  $region46: #{tpu_custom_call.1} parent=0
    _
  %s9 = ssub.s32 1, %s7
  %s10 = scalar_select 0, %s9, %s7
  $region1: #{tpu_custom_call.1} parent=0
    #allocation2 [shape = 'u8[4096]{0}', space=vmem, size = 0x1000, scoped, tag = 'input window, operand 0, single buffered']
    #allocation3 [shape = 's32[1]{0}', space=sflag, size = 0x4, scoped, tag = 'scoped memory for tpu_custom_call.1']
    #allocation4 [shape = 's32[1]{0}', space=sflag, size = 0x4, scoped, tag = 'scoped memory for tpu_custom_call.1']
    #allocation5 [shape = 'u8[4096]{0}', space=vmem, size = 0x1000, scoped, tag = 'input window, operand 1, single buffered']
    #allocation6 [shape = 's32[1]{0}', space=sflag, size = 0x4, scoped, tag = 'scoped memory for tpu_custom_call.1']
    #allocation7 [shape = 'u8[262144]{0}', space=vmem, size = 0x40000, scoped, tag = 'input window, operand 2, single buffered']
    #allocation8 [shape = 'u8[4096]{0}', space=vmem, size = 0x1000, scoped, tag = 'output window, operand 0, single buffered']
    #allocation9 [shape = 'u8[4096]{0}', space=vmem, size = 0x1000, scoped, tag = 'output window, operand 1, single buffered']
    #allocation10 [shape = 's32[1]{0}', space=sflag, size = 0x4, scoped, tag = 'scoped memory for tpu_custom_call.1']
    %11 = vsyncpa [#allocation3], 0
    %12 = vsyncpa [#allocation6], 0
    %13 = vsyncpa [#allocation4], 0
    %14 = vsyncpa [#allocation10], 0
    // Predicated region
    $region2: #{tpu_custom_call.1} parent=1 // pred_check
      _
    $region3: #{tpu_custom_call.1} parent=1 // pred_check_branch
      %16 = sbr.rel (0) target = $region5
    $region4: #{tpu_custom_call.1} parent=1 // pred_region
      %s18 = ssub.s32 128, 128
      %19 = vsyncadd [#allocation3], %s18
      %s21 = sshll.u32 [#allocation2], 4
      %s22 = int_to_ptr.vmem [resolvable:$true] %s21
      %24 = dma.hbm_to_vmem [thread:$0]  %s0, 128, %s22, [#allocation3]
    $region5: #{tpu_custom_call.1} parent=1 // pred_fallthru
      _
    // Predicated region
    $region6: #{tpu_custom_call.1} parent=1 // pred_check
      _
    $region7: #{tpu_custom_call.1} parent=1 // pred_check_branch
      %26 = sbr.rel (0) target = $region9
    $region8: #{tpu_custom_call.1} parent=1 // pred_region
      %s28 = ssub.s32 128, 128
      %29 = vsyncadd [#allocation6], %s28
      %s31 = sshll.u32 [#allocation5], 4
      %s32 = int_to_ptr.vmem [resolvable:$true] %s31
      %34 = dma.hbm_to_vmem [thread:$0]  %s1, 128, %s32, [#allocation6]
    $region9: #{tpu_custom_call.1} parent=1 // pred_fallthru
      _
    // Predicated region
    $region10: #{tpu_custom_call.1} parent=1 // pred_check
      _
    $region11: #{tpu_custom_call.1} parent=1 // pred_check_branch
      %36 = sbr.rel (0) target = $region13
    $region12: #{tpu_custom_call.1} parent=1 // pred_region
      %s38 = ssub.s32 8192, 8192
      %39 = vsyncadd [#allocation6], %s38
      %s40 = sshll.u32 [#allocation7], 4
      %s41 = int_to_ptr.vmem [resolvable:$true] %s40
      %46 = dma.hbm_to_vmem [thread:$0]  %s2, 8192, %s41, [#allocation6], 256, 256, 16
    $region13: #{tpu_custom_call.1} parent=1 // pred_fallthru
      _
    // Predicated region
    $region14: #{tpu_custom_call.1} parent=1 // pred_check
      _
    $region15: #{tpu_custom_call.1} parent=1 // pred_check_branch
      %48 = sbr.rel (0) target = $region17
    $region16: #{tpu_custom_call.1} parent=1 // pred_region
      _
    $region17: #{tpu_custom_call.1} parent=1 // pred_fallthru
      _
    // Predicated region
    $region18: #{tpu_custom_call.1} parent=1 // pred_check
      _
    $region19: #{tpu_custom_call.1} parent=1 // pred_check_branch
      %50 = sbr.rel (0) target = $region21
    $region20: #{tpu_custom_call.1} parent=1 // pred_region
      %51 = dma.done [#allocation3], 128
    $region21: #{tpu_custom_call.1} parent=1 // pred_fallthru
      _
    // Predicated region
    $region22: #{tpu_custom_call.1} parent=1 // pred_check
      _
    $region23: #{tpu_custom_call.1} parent=1 // pred_check_branch
      %53 = sbr.rel (0) target = $region25
    $region24: #{tpu_custom_call.1} parent=1 // pred_region
      %54 = dma.done [#allocation6], 128
    $region25: #{tpu_custom_call.1} parent=1 // pred_fallthru
      _
    // Predicated region
    $region26: #{tpu_custom_call.1} parent=1 // pred_check
      _
    $region27: #{tpu_custom_call.1} parent=1 // pred_check_branch
      %56 = sbr.rel (0) target = $region29
    $region28: #{tpu_custom_call.1} parent=1 // pred_region
      %57 = dma.done [#allocation6], 8192
    $region29: #{tpu_custom_call.1} parent=1 // pred_fallthru
      _
    %v58 = vld [vmem:[#allocation2] sm:$0xff]
    %v59 = vld [vmem:[#allocation7] sm:$0xff]
    %v60 = vld [vmem:[#allocation7 + $0x8] sm:$0xff]
    %v61 = vld [vmem:[#allocation7 + $0x10] sm:$0xff]
    %v62 = vld [vmem:[#allocation7 + $0x18] sm:$0xff]
    %v63 = vld [vmem:[#allocation7 + $0x20] sm:$0xff]
    %v64 = vld [vmem:[#allocation7 + $0x28] sm:$0xff]
    %v65 = vld [vmem:[#allocation7 + $0x30] sm:$0xff]
    %v66 = vld [vmem:[#allocation7 + $0x38] sm:$0xff]
    %v67 = vld [vmem:[#allocation7 + $0x40] sm:$0xff]
    %v68 = vld [vmem:[#allocation7 + $0x48] sm:$0xff]
    %v69 = vld [vmem:[#allocation7 + $0x50] sm:$0xff]
    %v70 = vld [vmem:[#allocation7 + $0x58] sm:$0xff]
    %v71 = vld [vmem:[#allocation7 + $0x60] sm:$0xff]
    %v72 = vld [vmem:[#allocation7 + $0x68] sm:$0xff]
    %v73 = vld [vmem:[#allocation7 + $0x70] sm:$0xff]
    %v74 = vld [vmem:[#allocation7 + $0x78] sm:$0xff]
    %v75 = vld [vmem:[#allocation7 + $0x80] sm:$0xff]
    %v76 = vld [vmem:[#allocation7 + $0x88] sm:$0xff]
    %v77 = vld [vmem:[#allocation7 + $0x90] sm:$0xff]
    %v78 = vld [vmem:[#allocation7 + $0x98] sm:$0xff]
    %v79 = vld [vmem:[#allocation7 + $0xa0] sm:$0xff]
    %v80 = vld [vmem:[#allocation7 + $0xa8] sm:$0xff]
    %v81 = vld [vmem:[#allocation7 + $0xb0] sm:$0xff]
    %v82 = vld [vmem:[#allocation7 + $0xb8] sm:$0xff]
    %v83 = vld [vmem:[#allocation7 + $0xc0] sm:$0xff]
    %v84 = vld [vmem:[#allocation7 + $0xc8] sm:$0xff]
    %v85 = vld [vmem:[#allocation7 + $0xd0] sm:$0xff]
    %v86 = vld [vmem:[#allocation7 + $0xd8] sm:$0xff]
    %v87 = vld [vmem:[#allocation7 + $0xe0] sm:$0xff]
    %v88 = vld [vmem:[#allocation7 + $0xe8] sm:$0xff]
    %v89 = vld [vmem:[#allocation7 + $0xf0] sm:$0xff]
    %v90 = vld [vmem:[#allocation7 + $0xf8] sm:$0xff]
    %v91 = vld [vmem:[#allocation7 + $0x100] sm:$0xff]
    %v92 = vld [vmem:[#allocation7 + $0x108] sm:$0xff]
    %v93 = vld [vmem:[#allocation7 + $0x110] sm:$0xff]
    %v94 = vld [vmem:[#allocation7 + $0x118] sm:$0xff]
    %v95 = vld [vmem:[#allocation7 + $0x120] sm:$0xff]
    %v96 = vld [vmem:[#allocation7 + $0x128] sm:$0xff]
    %v97 = vld [vmem:[#allocation7 + $0x130] sm:$0xff]
    %v98 = vld [vmem:[#allocation7 + $0x138] sm:$0xff]
    %v99 = vld [vmem:[#allocation7 + $0x140] sm:$0xff]
    %v100 = vld [vmem:[#allocation7 + $0x148] sm:$0xff]
    %v101 = vld [vmem:[#allocation7 + $0x150] sm:$0xff]
    %v102 = vld [vmem:[#allocation7 + $0x158] sm:$0xff]
    %v103 = vld [vmem:[#allocation7 + $0x160] sm:$0xff]
    %v104 = vld [vmem:[#allocation7 + $0x168] sm:$0xff]
    %v105 = vld [vmem:[#allocation7 + $0x170] sm:$0xff]
    %v106 = vld [vmem:[#allocation7 + $0x178] sm:$0xff]
    %v107 = vld [vmem:[#allocation7 + $0x180] sm:$0xff]
    %v108 = vld [vmem:[#allocation7 + $0x188] sm:$0xff]
    %v109 = vld [vmem:[#allocation7 + $0x190] sm:$0xff]
    %v110 = vld [vmem:[#allocation7 + $0x198] sm:$0xff]
    %v111 = vld [vmem:[#allocation7 + $0x1a0] sm:$0xff]
    %v112 = vld [vmem:[#allocation7 + $0x1a8] sm:$0xff]
    %v113 = vld [vmem:[#allocation7 + $0x1b0] sm:$0xff]
    %v114 = vld [vmem:[#allocation7 + $0x1b8] sm:$0xff]
    %v115 = vld [vmem:[#allocation7 + $0x1c0] sm:$0xff]
    %v116 = vld [vmem:[#allocation7 + $0x1c8] sm:$0xff]
    %v117 = vld [vmem:[#allocation7 + $0x1d0] sm:$0xff]
    %v118 = vld [vmem:[#allocation7 + $0x1d8] sm:$0xff]
    %v119 = vld [vmem:[#allocation7 + $0x1e0] sm:$0xff]
    %v120 = vld [vmem:[#allocation7 + $0x1e8] sm:$0xff]
    %v121 = vld [vmem:[#allocation7 + $0x1f0] sm:$0xff]
    %v122 = vld [vmem:[#allocation7 + $0x1f8] sm:$0xff]
    %v123 = vld [vmem:[%s3] sm:$0xf]
    %v125 = vlaneseq
    %v126 = vshrl.u32 %v125, 7
    %v127 = vsub.s32 0, %v126
    %v128 = vrot.slane %v123, %v127
    %v129 = vlaneseq
    %v130 = vshrl.u32 %v129, 7
    %v131 = vsub.s32 1, %v130
    %v132 = vrot.slane %v123, %v131
    %v133 = vlaneseq
    %v134 = vshrl.u32 %v133, 7
    %v135 = vsub.s32 2, %v134
    %v136 = vrot.slane %v123, %v135
    %v137 = vlaneseq
    %v138 = vshrl.u32 %v137, 7
    %v139 = vsub.s32 3, %v138
    %v140 = vrot.slane %v123, %v139
    %v146 = vunpack.c.l.b16 %v58
    %v147 = vunpack.c.h.b16 %v58
    %v148 = vpack.c.b16 %v146, %v146
    %v149 = vpack.c.b16 %v147, %v147
    %v216 = vunpack.c.l.b16 %v59
    %v217 = vunpack.c.h.b16 %v59
    %v218 = vunpack.c.l.b16 %v60
    %v219 = vunpack.c.h.b16 %v60
    %v220 = vunpack.c.l.b16 %v61
    %v221 = vunpack.c.h.b16 %v61
    %v222 = vunpack.c.l.b16 %v62
    %v223 = vunpack.c.h.b16 %v62
    %v224 = vunpack.c.l.b16 %v63
    %v225 = vunpack.c.h.b16 %v63
    %v226 = vunpack.c.l.b16 %v64
    %v227 = vunpack.c.h.b16 %v64
    %v228 = vunpack.c.l.b16 %v65
    %v229 = vunpack.c.h.b16 %v65
    %v230 = vunpack.c.l.b16 %v66
    %v231 = vunpack.c.h.b16 %v66
    %v232 = vunpack.c.l.b16 %v67
    %v233 = vunpack.c.h.b16 %v67
    %v234 = vunpack.c.l.b16 %v68
    %v235 = vunpack.c.h.b16 %v68
    %v236 = vunpack.c.l.b16 %v69
    %v237 = vunpack.c.h.b16 %v69
    %v238 = vunpack.c.l.b16 %v70
    %v239 = vunpack.c.h.b16 %v70
    %v240 = vunpack.c.l.b16 %v71
    %v241 = vunpack.c.h.b16 %v71
    %v242 = vunpack.c.l.b16 %v72
    %v243 = vunpack.c.h.b16 %v72
    %v244 = vunpack.c.l.b16 %v73
    %v245 = vunpack.c.h.b16 %v73
    %v246 = vunpack.c.l.b16 %v74
    %v247 = vunpack.c.h.b16 %v74
    %v248 = vunpack.c.l.b16 %v75
    %v249 = vunpack.c.h.b16 %v75
    %v250 = vunpack.c.l.b16 %v76
    %v251 = vunpack.c.h.b16 %v76
    %v252 = vunpack.c.l.b16 %v77
    %v253 = vunpack.c.h.b16 %v77
    %v254 = vunpack.c.l.b16 %v78
    %v255 = vunpack.c.h.b16 %v78
    %v256 = vunpack.c.l.b16 %v79
    %v257 = vunpack.c.h.b16 %v79
    %v258 = vunpack.c.l.b16 %v80
    %v259 = vunpack.c.h.b16 %v80
    %v260 = vunpack.c.l.b16 %v81
    %v261 = vunpack.c.h.b16 %v81
    %v262 = vunpack.c.l.b16 %v82
    %v263 = vunpack.c.h.b16 %v82
    %v264 = vunpack.c.l.b16 %v83
    %v265 = vunpack.c.h.b16 %v83
    %v266 = vunpack.c.l.b16 %v84
    %v267 = vunpack.c.h.b16 %v84
    %v268 = vunpack.c.l.b16 %v85
    %v269 = vunpack.c.h.b16 %v85
    %v270 = vunpack.c.l.b16 %v86
    %v271 = vunpack.c.h.b16 %v86
    %v272 = vunpack.c.l.b16 %v87
    %v273 = vunpack.c.h.b16 %v87
    %v274 = vunpack.c.l.b16 %v88
    %v275 = vunpack.c.h.b16 %v88
    %v276 = vunpack.c.l.b16 %v89
    %v277 = vunpack.c.h.b16 %v89
    %v278 = vunpack.c.l.b16 %v90
    %v279 = vunpack.c.h.b16 %v90
    %v280 = vunpack.c.l.b16 %v91
    %v281 = vunpack.c.h.b16 %v91
    %v282 = vunpack.c.l.b16 %v92
    %v283 = vunpack.c.h.b16 %v92
    %v284 = vunpack.c.l.b16 %v93
    %v285 = vunpack.c.h.b16 %v93
    %v286 = vunpack.c.l.b16 %v94
    %v287 = vunpack.c.h.b16 %v94
    %v288 = vunpack.c.l.b16 %v95
    %v289 = vunpack.c.h.b16 %v95
    %v290 = vunpack.c.l.b16 %v96
    %v291 = vunpack.c.h.b16 %v96
    %v292 = vunpack.c.l.b16 %v97
    %v293 = vunpack.c.h.b16 %v97
    %v294 = vunpack.c.l.b16 %v98
    %v295 = vunpack.c.h.b16 %v98
    %v296 = vunpack.c.l.b16 %v99
    %v297 = vunpack.c.h.b16 %v99
    %v298 = vunpack.c.l.b16 %v100
    %v299 = vunpack.c.h.b16 %v100
    %v300 = vunpack.c.l.b16 %v101
    %v301 = vunpack.c.h.b16 %v101
    %v302 = vunpack.c.l.b16 %v102
    %v303 = vunpack.c.h.b16 %v102
    %v304 = vunpack.c.l.b16 %v103
    %v305 = vunpack.c.h.b16 %v103
    %v306 = vunpack.c.l.b16 %v104
    %v307 = vunpack.c.h.b16 %v104
    %v308 = vunpack.c.l.b16 %v105
    %v309 = vunpack.c.h.b16 %v105
    %v310 = vunpack.c.l.b16 %v106
    %v311 = vunpack.c.h.b16 %v106
    %v312 = vunpack.c.l.b16 %v107
    %v313 = vunpack.c.h.b16 %v107
    %v314 = vunpack.c.l.b16 %v108
    %v315 = vunpack.c.h.b16 %v108
    %v316 = vunpack.c.l.b16 %v109
    %v317 = vunpack.c.h.b16 %v109
    %v318 = vunpack.c.l.b16 %v110
    %v319 = vunpack.c.h.b16 %v110
    %v320 = vunpack.c.l.b16 %v111
    %v321 = vunpack.c.h.b16 %v111
    %v322 = vunpack.c.l.b16 %v112
    %v323 = vunpack.c.h.b16 %v112
    %v324 = vunpack.c.l.b16 %v113
    %v325 = vunpack.c.h.b16 %v113
    %v326 = vunpack.c.l.b16 %v114
    %v327 = vunpack.c.h.b16 %v114
    %v328 = vunpack.c.l.b16 %v115
    %v329 = vunpack.c.h.b16 %v115
    %v330 = vunpack.c.l.b16 %v116
    %v331 = vunpack.c.h.b16 %v116
    %v332 = vunpack.c.l.b16 %v117
    %v333 = vunpack.c.h.b16 %v117
    %v334 = vunpack.c.l.b16 %v118
    %v335 = vunpack.c.h.b16 %v118
    %v336 = vunpack.c.l.b16 %v119
    %v337 = vunpack.c.h.b16 %v119
    %v338 = vunpack.c.l.b16 %v120
    %v339 = vunpack.c.h.b16 %v120
    %v340 = vunpack.c.l.b16 %v121
    %v341 = vunpack.c.h.b16 %v121
    %v342 = vunpack.c.l.b16 %v122
    %v343 = vunpack.c.h.b16 %v122
    %v344 = vpack.c.b16 %v220, %v216
    %v345 = vpack.c.b16 %v221, %v217
    %v346 = vpack.c.b16 %v222, %v218
    %v347 = vpack.c.b16 %v223, %v219
    %v348 = vpack.c.b16 %v228, %v224
    %v349 = vpack.c.b16 %v229, %v225
    %v350 = vpack.c.b16 %v230, %v226
    %v351 = vpack.c.b16 %v231, %v227
    %v352 = vpack.c.b16 %v236, %v232
    %v353 = vpack.c.b16 %v237, %v233
    %v354 = vpack.c.b16 %v238, %v234
    %v355 = vpack.c.b16 %v239, %v235
    %v356 = vpack.c.b16 %v244, %v240
    %v357 = vpack.c.b16 %v245, %v241
    %v358 = vpack.c.b16 %v246, %v242
    %v359 = vpack.c.b16 %v247, %v243
    %v360 = vpack.c.b16 %v252, %v248
    %v361 = vpack.c.b16 %v253, %v249
    %v362 = vpack.c.b16 %v254, %v250
    %v363 = vpack.c.b16 %v255, %v251
    %v364 = vpack.c.b16 %v260, %v256
    %v365 = vpack.c.b16 %v261, %v257
    %v366 = vpack.c.b16 %v262, %v258
    %v367 = vpack.c.b16 %v263, %v259
    %v368 = vpack.c.b16 %v268, %v264
    %v369 = vpack.c.b16 %v269, %v265
    %v370 = vpack.c.b16 %v270, %v266
    %v371 = vpack.c.b16 %v271, %v267
    %v372 = vpack.c.b16 %v276, %v272
    %v373 = vpack.c.b16 %v277, %v273
    %v374 = vpack.c.b16 %v278, %v274
    %v375 = vpack.c.b16 %v279, %v275
    %v376 = vpack.c.b16 %v284, %v280
    %v377 = vpack.c.b16 %v285, %v281
    %v378 = vpack.c.b16 %v286, %v282
    %v379 = vpack.c.b16 %v287, %v283
    %v380 = vpack.c.b16 %v292, %v288
    %v381 = vpack.c.b16 %v293, %v289
    %v382 = vpack.c.b16 %v294, %v290
    %v383 = vpack.c.b16 %v295, %v291
    %v384 = vpack.c.b16 %v300, %v296
    %v385 = vpack.c.b16 %v301, %v297
    %v386 = vpack.c.b16 %v302, %v298
    %v387 = vpack.c.b16 %v303, %v299
    %v388 = vpack.c.b16 %v308, %v304
    %v389 = vpack.c.b16 %v309, %v305
    %v390 = vpack.c.b16 %v310, %v306
    %v391 = vpack.c.b16 %v311, %v307
    %v392 = vpack.c.b16 %v316, %v312
    %v393 = vpack.c.b16 %v317, %v313
    %v394 = vpack.c.b16 %v318, %v314
    %v395 = vpack.c.b16 %v319, %v315
    %v396 = vpack.c.b16 %v324, %v320
    %v397 = vpack.c.b16 %v325, %v321
    %v398 = vpack.c.b16 %v326, %v322
    %v399 = vpack.c.b16 %v327, %v323
    %v400 = vpack.c.b16 %v332, %v328
    %v401 = vpack.c.b16 %v333, %v329
    %v402 = vpack.c.b16 %v334, %v330
    %v403 = vpack.c.b16 %v335, %v331
    %v404 = vpack.c.b16 %v340, %v336
    %v405 = vpack.c.b16 %v341, %v337
    %v406 = vpack.c.b16 %v342, %v338
    %v407 = vpack.c.b16 %v343, %v339
    %472 = vmatprep.subr.bf16.mxu0 %v373
    %473 = vmatpush1.bf16.msra.mxu0 %v372
    %474 = vmatprep.subr.bf16.mxu0 %v369
    %475 = vmatpush1.bf16.msra.mxu0 %v368
    %476 = vmatprep.subr.bf16.mxu0 %v365
    %477 = vmatpush1.bf16.msra.mxu0 %v364
    %478 = vmatprep.subr.bf16.mxu0 %v361
    %479 = vmatpush1.bf16.msra.mxu0 %v360
    %480 = vmatprep.subr.bf16.mxu0 %v357
    %481 = vmatpush1.bf16.msra.mxu0 %v356
    %482 = vmatprep.subr.bf16.mxu0 %v353
    %483 = vmatpush1.bf16.msra.mxu0 %v352
    %484 = vmatprep.subr.bf16.mxu0 %v349
    %485 = vmatpush1.bf16.msra.mxu0 %v348
    %486 = vmatprep.subr.bf16.mxu0 %v345
    %487 = vmatpush1.bf16.msra.mxu0 %v344
    %488 = vmatprep.subr.bf16.mxu0 %v405
    %489 = vmatpush2.bf16.msra.mxu0 %v404
    %490 = vmatprep.subr.bf16.mxu0 %v401
    %491 = vmatpush2.bf16.msra.mxu0 %v400
    %492 = vmatprep.subr.bf16.mxu0 %v397
    %493 = vmatpush2.bf16.msra.mxu0 %v396
    %494 = vmatprep.subr.bf16.mxu0 %v393
    %495 = vmatpush2.bf16.msra.mxu0 %v392
    %496 = vmatprep.subr.bf16.mxu0 %v389
    %497 = vmatpush2.bf16.msra.mxu0 %v388
    %498 = vmatprep.subr.bf16.mxu0 %v385
    %499 = vmatpush2.bf16.msra.mxu0 %v384
    %500 = vmatprep.subr.bf16.mxu0 %v381
    %501 = vmatpush2.bf16.msra.mxu0 %v380
    %502 = vmatprep.subr.bf16.mxu0 %v377
    %503 = vmatpush2.bf16.msra.mxu0 %v376
    %504 = vmatprep.mubr.bf16.mxu0 %v149
    %505 = vmatmul.mubr.bf16.gmra.mxu0 %v148
    %v506 = vpop.f32.mrf.mxu0
    %v507 = vadd.f32 %v128, %v506
    %v508 = vpop.f32.mrf.mxu0
    %v509 = vadd.f32 %v132, %v508
    %v510 = vpop.f32.mrf.mxu0
    %v511 = vpop.f32.mrf.mxu0
    %512 = vdwg.mxu0
    %513 = vmatprep.subr.bf16.mxu0 %v375
    %514 = vmatpush1.bf16.msra.mxu0 %v374
    %515 = vmatprep.subr.bf16.mxu0 %v371
    %516 = vmatpush1.bf16.msra.mxu0 %v370
    %517 = vmatprep.subr.bf16.mxu0 %v367
    %518 = vmatpush1.bf16.msra.mxu0 %v366
    %519 = vmatprep.subr.bf16.mxu0 %v363
    %520 = vmatpush1.bf16.msra.mxu0 %v362
    %521 = vmatprep.subr.bf16.mxu0 %v359
    %522 = vmatpush1.bf16.msra.mxu0 %v358
    %523 = vmatprep.subr.bf16.mxu0 %v355
    %524 = vmatpush1.bf16.msra.mxu0 %v354
    %525 = vmatprep.subr.bf16.mxu0 %v351
    %526 = vmatpush1.bf16.msra.mxu0 %v350
    %527 = vmatprep.subr.bf16.mxu0 %v347
    %528 = vmatpush1.bf16.msra.mxu0 %v346
    %529 = vmatprep.subr.bf16.mxu0 %v407
    %530 = vmatpush2.bf16.msra.mxu0 %v406
    %531 = vmatprep.subr.bf16.mxu0 %v403
    %532 = vmatpush2.bf16.msra.mxu0 %v402
    %533 = vmatprep.subr.bf16.mxu0 %v399
    %534 = vmatpush2.bf16.msra.mxu0 %v398
    %535 = vmatprep.subr.bf16.mxu0 %v395
    %536 = vmatpush2.bf16.msra.mxu0 %v394
    %537 = vmatprep.subr.bf16.mxu0 %v391
    %538 = vmatpush2.bf16.msra.mxu0 %v390
    %539 = vmatprep.subr.bf16.mxu0 %v387
    %540 = vmatpush2.bf16.msra.mxu0 %v386
    %541 = vmatprep.subr.bf16.mxu0 %v383
    %542 = vmatpush2.bf16.msra.mxu0 %v382
    %543 = vmatprep.subr.bf16.mxu0 %v379
    %544 = vmatpush2.bf16.msra.mxu0 %v378
    %545 = vmatprep.mubr.bf16.mxu0 %v149
    %546 = vmatmul.mubr.bf16.gmra.mxu0 %v148
    %v547 = vpop.f32.mrf.mxu0
    %v548 = vadd.f32 %v136, %v547
    %v549 = vpop.f32.mrf.mxu0
    %v550 = vadd.f32 %v140, %v549
    %v551 = vpop.f32.mrf.mxu0
    %v552 = vpop.f32.mrf.mxu0
    %553 = vdwg.mxu0
    %v554 = vmul.f32 %v507, 0.5
    %v555 = vtanh.pop %v554
    %v556 = vmul.f32 %v555, 0.5
    %v557 = vadd.f32 %v556, 0.5
    %v558 = vmul.f32 %v509, 0.5
    %v559 = vtanh.pop %v558
    %v560 = vmul.f32 %v559, 0.5
    %v561 = vadd.f32 %v560, 0.5
    %v562 = vmul.f32 %v548, 0.5
    %v563 = vtanh.pop %v562
    %v564 = vmul.f32 %v563, 0.5
    %v565 = vadd.f32 %v564, 0.5
    %v566 = vmul.f32 %v550, 0.5
    %v567 = vtanh.pop %v566
    %v568 = vmul.f32 %v567, 0.5
    %v569 = vadd.f32 %v568, 0.5
    %v570 = vld [vmem:[#allocation5] sm:$0xff]
    %v571 = vmul.f32 %v561, %v570
    %v572 = vmul.f32 %v557, %v569
    %v573 = vadd.f32 %v571, %v572
    %v574 = vtanh.pop %v573
    %v575 = vmul.f32 %v565, %v574
    %576 = vst [vmem:[#allocation8] sm:$0xff] %v575
    %577 = vst [vmem:[#allocation9] sm:$0xff] %v573
    // Predicated region
    $region30: #{tpu_custom_call.1} parent=1 // pred_check
      _
    $region31: #{tpu_custom_call.1} parent=1 // pred_check_branch
      %579 = sbr.rel (0) target = $region33
    $region32: #{tpu_custom_call.1} parent=1 // pred_region
      %s581 = ssub.s32 128, 128
      %582 = vsyncadd [#allocation4], %s581
      %s584 = sshll.u32 [#allocation8], 4
      %s585 = int_to_ptr.vmem [resolvable:$true] %s584
      %587 = dma.vmem_to_hbm [thread:$0]  %s585, 128, %s4, [#allocation4]
    $region33: #{tpu_custom_call.1} parent=1 // pred_fallthru
      _
    // Predicated region
    $region34: #{tpu_custom_call.1} parent=1 // pred_check
      _
    $region35: #{tpu_custom_call.1} parent=1 // pred_check_branch
      %589 = sbr.rel (0) target = $region37
    $region36: #{tpu_custom_call.1} parent=1 // pred_region
      %s591 = ssub.s32 128, 128
      %592 = vsyncadd [#allocation10], %s591
      %s594 = sshll.u32 [#allocation9], 4
      %s595 = int_to_ptr.vmem [resolvable:$true] %s594
      %597 = dma.vmem_to_hbm [thread:$0]  %s595, 128, %s5, [#allocation10]
    $region37: #{tpu_custom_call.1} parent=1 // pred_fallthru
      _
    // Predicated region
    $region38: #{tpu_custom_call.1} parent=1 // pred_check
      _
    $region39: #{tpu_custom_call.1} parent=1 // pred_check_branch
      %599 = sbr.rel (0) target = $region41
    $region40: #{tpu_custom_call.1} parent=1 // pred_region
      %600 = dma.done [#allocation4], 128
    $region41: #{tpu_custom_call.1} parent=1 // pred_fallthru
      _
    // Predicated region
    $region42: #{tpu_custom_call.1} parent=1 // pred_check
      _
    $region43: #{tpu_custom_call.1} parent=1 // pred_check_branch
      %602 = sbr.rel (0) target = $region45
    $region44: #{tpu_custom_call.1} parent=1 // pred_region
      %603 = dma.done [#allocation10], 128
    $region45: #{tpu_custom_call.1} parent=1 // pred_fallthru
      _
    %604 = vsyncpa [#allocation3], 1
    %605 = vsyncpa [#allocation6], 1
    %606 = vsyncpa [#allocation4], 1
    %607 = vsyncpa [#allocation10], 1

</llo_original>
